<compile_context>
chip_gen: v6e
topology: v6e:2x2x1
jax: 0.10.0
libtpu: 0.0.40
codegen_flags: <defaults>
</compile_context>

<pallas_src>
import functools

import jax
import jax.numpy as jnp
from jax.experimental import pallas as pl
from jax.experimental.pallas import tpu as pltpu

DIM = 128            # embedding dim (lane axis)
NUM_SPECIES = 4      # one-hot atom species (Encoder)
CUTOFF = 4.0
MAX_ROW_TILE = 256   # big sublane row tile (perf review: 256-1024)
LN_EPS = 1e-5        # PyTorch LayerNorm default
AGG_EPS = 1e-5       # gated-aggregation denominator epsilon


# ------------------------------ small helpers ------------------------------
def _cdiv(a, b):
    return -(-a // b)


def _round_up(n, m):
    return _cdiv(n, m) * m


def _choose_tile(n, max_tile=MAX_ROW_TILE):
    """Row tile: multiple of 8, <= max_tile, >= 2 grid steps when possible."""
    if n <= 8:
        return 8
    t = _round_up(_cdiv(n, 2), 8)      # aim for at least 2 parallel grid steps
    return max(8, min(t, max_tile))


def _pad_rows(x, p):
    n = x.shape[0]
    if n == p:
        return x
    pad = [(0, p - n)] + [(0, 0)] * (x.ndim - 1)
    return jnp.pad(x, pad)


def _row_spec(t):
    return pl.BlockSpec((t, DIM), lambda i: (i, 0))


def _const_spec(shape):
    return pl.BlockSpec(shape, lambda i: (0, 0))


def _layer_norm(h, gamma, beta):
    mu = jnp.mean(h, axis=-1, keepdims=True)
    var = jnp.mean(jnp.square(h - mu), axis=-1, keepdims=True)
    return (h - mu) * jax.lax.rsqrt(var + LN_EPS) * gamma + beta


def _silu(x):
    return x * jax.nn.sigmoid(x)


# =====================  Processor: GatedGCN Pallas kernels  =================
def _node_linear_kernel(x_ref, ws_ref, bs_ref, wn_ref, bn_ref, hs_ref, hn_ref):
    x = x_ref[...]
    hs_ref[...] = jnp.dot(x, ws_ref[...],
                          preferred_element_type=jnp.float32) + bs_ref[...]
    hn_ref[...] = jnp.dot(x, wn_ref[...],
                          preferred_element_type=jnp.float32) + bn_ref[...]


def _edge_update_kernel(xd_ref, xs_ref, e_ref, m_ref,
                        wa_ref, ba_ref, wb_ref, bb_ref, wc_ref, bc_ref,
                        g_ref, bt_ref,
                        e_out_ref, msg_ref, sig_ref, *, n_valid):
    e_hat = (jnp.dot(xd_ref[...], wa_ref[...],
                     preferred_element_type=jnp.float32) + ba_ref[...]
             + jnp.dot(xs_ref[...], wb_ref[...],
                       preferred_element_type=jnp.float32) + bb_ref[...]
             + jnp.dot(e_ref[...], wc_ref[...],
                       preferred_element_type=jnp.float32) + bc_ref[...])
    e_out_ref[...] = e_ref[...] + _silu(_layer_norm(e_hat, g_ref[...], bt_ref[...]))

    sigma = jax.nn.sigmoid(e_hat)
    # mask padded edge rows so they are inert in the scatter-add aggregation
    t = e_ref.shape[0]
    row = pl.program_id(0) * t + jax.lax.broadcasted_iota(jnp.int32, (t, 1), 0)
    valid = (row < n_valid).astype(jnp.float32)
    sigma = sigma * valid
    sig_ref[...] = sigma
    msg_ref[...] = sigma * m_ref[...]


def _node_update_kernel(x_ref, hs_ref, num_ref, den_ref, g_ref, bt_ref, o_ref,
                        *, eps):
    agg = num_ref[...] / (den_ref[...] + eps)
    h = hs_ref[...] + agg
    o_ref[...] = x_ref[...] + _silu(_layer_norm(h, g_ref[...], bt_ref[...]))


def _run_node_linear(x, p):
    n = x.shape[0]
    t = _choose_tile(n)
    pad_n = _round_up(n, t)
    xp = _pad_rows(x, pad_n)
    hs, hn = pl.pallas_call(
        _node_linear_kernel,
        out_shape=(jax.ShapeDtypeStruct((pad_n, DIM), jnp.float32),
                   jax.ShapeDtypeStruct((pad_n, DIM), jnp.float32)),
        grid_spec=pltpu.PrefetchScalarGridSpec(
            num_scalar_prefetch=0,
            grid=(pad_n // t,),
            in_specs=[_row_spec(t),
                      _const_spec((DIM, DIM)), _const_spec((1, DIM)),
                      _const_spec((DIM, DIM)), _const_spec((1, DIM))],
            out_specs=[_row_spec(t), _row_spec(t)],
        ),
        compiler_params=pltpu.CompilerParams(dimension_semantics=("parallel",)),
    )(xp, p["w_self"], p["b_self"], p["w_nbr"], p["b_nbr"])
    return hs[:n], hn[:n]


def _run_edge_update(x_dst, x_src, e, m_src, p):
    n = e.shape[0]
    t = _choose_tile(n)
    pad_n = _round_up(n, t)
    args = [_pad_rows(a, pad_n) for a in (x_dst, x_src, e, m_src)]
    e_new, msg, sigma = pl.pallas_call(
        functools.partial(_edge_update_kernel, n_valid=n),
        out_shape=(jax.ShapeDtypeStruct((pad_n, DIM), jnp.float32),) * 3,
        grid_spec=pltpu.PrefetchScalarGridSpec(
            num_scalar_prefetch=0,
            grid=(pad_n // t,),
            in_specs=[_row_spec(t)] * 4 + [
                _const_spec((DIM, DIM)), _const_spec((1, DIM)),
                _const_spec((DIM, DIM)), _const_spec((1, DIM)),
                _const_spec((DIM, DIM)), _const_spec((1, DIM)),
                _const_spec((1, DIM)), _const_spec((1, DIM))],
            out_specs=[_row_spec(t)] * 3,
        ),
        compiler_params=pltpu.CompilerParams(dimension_semantics=("parallel",)),
    )(*args, p["w_A"], p["b_A"], p["w_B"], p["b_B"], p["w_C"], p["b_C"],
      p["ln_e_g"], p["ln_e_b"])
    return e_new[:n], msg[:n], sigma[:n]


def _run_node_update(x, h_self, num, den, p):
    n = x.shape[0]
    t = _choose_tile(n)
    pad_n = _round_up(n, t)
    args = [_pad_rows(a, pad_n) for a in (x, h_self, num, den)]
    out = pl.pallas_call(
        functools.partial(_node_update_kernel, eps=AGG_EPS),
        out_shape=jax.ShapeDtypeStruct((pad_n, DIM), jnp.float32),
        grid_spec=pltpu.PrefetchScalarGridSpec(
            num_scalar_prefetch=0,
            grid=(pad_n // t,),
            in_specs=[_row_spec(t)] * 4 + [_const_spec((1, DIM)),
                                           _const_spec((1, DIM))],
            out_specs=_row_spec(t),
        ),
        compiler_params=pltpu.CompilerParams(dimension_semantics=("parallel",)),
    )(*args, p["ln_x_g"], p["ln_x_b"])
    return out[:n]


def gated_gcn_apply(x, edge_index, e, p):
    """One edge-gated graph convolution layer. Returns (x_new, e_new)."""
    n_node = x.shape[0]
    src, dst = edge_index[0], edge_index[1]

    h_self, h_nbr = _run_node_linear(x, p)

    # TODO(synk): data-dependent gathers / scatter-add kept in XLA (see header).
    x_dst = jnp.take(x, dst, axis=0)
    x_src = jnp.take(x, src, axis=0)
    m_src = jnp.take(h_nbr, src, axis=0)

    e_new, msg, sigma = _run_edge_update(x_dst, x_src, e, m_src, p)

    num = jax.ops.segment_sum(msg, dst, num_segments=n_node)
    den = jax.ops.segment_sum(sigma, dst, num_segments=n_node)

    x_new = _run_node_update(x, h_self, num, den, p)
    return x_new, e_new


def processor_forward(data, params, num_convs):
    """Mirror of Processor.forward."""
    h_atm, h_bnd, h_ang = data["h_atm"], data["h_bnd"], data["h_ang"]
    edge_index_G = data["edge_index_G"]
    edge_index_A = data["edge_index_A"]
    for i in range(num_convs):
        h_bnd, h_ang = gated_gcn_apply(h_bnd, edge_index_A, h_ang,
                                       params["bnd_ang"][i])
        h_atm, h_bnd = gated_gcn_apply(h_atm, edge_index_G, h_bnd,
                                       params["atm_bnd"][i])
    out = dict(data)
    out.update(h_atm=h_atm, h_bnd=h_bnd, h_ang=h_ang)
    return out


# ============  Encoder embedding kernels (inputs for the Processor)  ========
def _atom_kernel(spec_ref, w1_ref, b1_ref, w2_ref, b2_ref, g_ref, bt_ref, o_ref):
    spec = spec_ref[...]                                   # [T, 1] int32
    w1 = w1_ref[...]                                       # [NUM_SPECIES, DIM]
    # K=4 one-hot matmul replaced by 4 VPU selects (perf review).
    h = jnp.zeros((spec.shape[0], DIM), jnp.float32)
    for s in range(NUM_SPECIES):
        h = h + jnp.where(spec == s, 1.0, 0.0) * w1[s:s + 1, :]
    h = _silu(h + b1_ref[...])
    h = jnp.dot(h, w2_ref[...], preferred_element_type=jnp.float32) + b2_ref[...]
    o_ref[...] = _layer_norm(h, g_ref[...], bt_ref[...])


def _bnd_ang_kernel(xb_ref, xa_ref, nvec_ref, mu_ref, ob_ref, oa_ref,
                    *, cutoff, eps):
    # Bessel basis for bond lengths: sqrt(2/c)*sin(n*pi*(x+eps)/c)/(x+eps)
    xb = xb_ref[...] + eps                                 # [T, 1]
    n = nvec_ref[...]                                      # [1, DIM] (hoisted)
    ob_ref[...] = ((2.0 / cutoff) ** 0.5) * jnp.sin(n * (jnp.pi / cutoff) * xb) / xb
    # Gaussian basis on cos(angle): exp(-((cos(x)-mu)/step)^2)/1.12
    ca = jnp.cos(xa_ref[...])                              # [T, 1]
    mu = mu_ref[...]                                       # [1, DIM] (hoisted)
    step = 2.0 / (DIM - 1)
    d = (ca - mu) * (1.0 / step)
    oa_ref[...] = jnp.exp(-(d * d)) / 1.12


def embed_atm(species, w1, b1, w2, b2, gamma, beta):
    n = species.shape[0]
    t = _choose_tile(n)
    pad_n = _round_up(n, t)
    sp = _pad_rows(species.reshape(n, 1).astype(jnp.int32), pad_n)
    out = pl.pallas_call(
        _atom_kernel,
        out_shape=jax.ShapeDtypeStruct((pad_n, DIM), jnp.float32),
        grid_spec=pltpu.PrefetchScalarGridSpec(
            num_scalar_prefetch=0,
            grid=(pad_n // t,),
            in_specs=[pl.BlockSpec((t, 1), lambda i: (i, 0)),
                      _const_spec((NUM_SPECIES, DIM)), _const_spec((1, DIM)),
                      _const_spec((DIM, DIM)), _const_spec((1, DIM)),
                      _const_spec((1, DIM)), _const_spec((1, DIM))],
            out_specs=_row_spec(t),
        ),
        compiler_params=pltpu.CompilerParams(dimension_semantics=("parallel",)),
    )(sp, w1, b1, w2, b2, gamma, beta)
    return out[:n]


def embed_bnd_ang(x_bnd, x_ang, cutoff):
    """Fused bond (Bessel) + angle (Gaussian-of-cos) basis expansion."""
    nb, na = x_bnd.shape[0], x_ang.shape[0]
    n = max(nb, na)
    t = _choose_tile(n)
    pad_n = _round_up(n, t)
    xb = _pad_rows(x_bnd.reshape(nb, 1).astype(jnp.float32), pad_n)
    xa = _pad_rows(x_ang.reshape(na, 1).astype(jnp.float32), pad_n)
    nvec = (jnp.arange(DIM, dtype=jnp.float32) + 1.0).reshape(1, DIM)
    mu = jnp.linspace(-1.0, 1.0, DIM, dtype=jnp.float32).reshape(1, DIM)
    hb, ha = pl.pallas_call(
        functools.partial(_bnd_ang_kernel, cutoff=float(cutoff), eps=1e-5),
        out_shape=(jax.ShapeDtypeStruct((pad_n, DIM), jnp.float32),) * 2,
        grid_spec=pltpu.PrefetchScalarGridSpec(
            num_scalar_prefetch=0,
            grid=(pad_n // t,),
            in_specs=[pl.BlockSpec((t, 1), lambda i: (i, 0)),
                      pl.BlockSpec((t, 1), lambda i: (i, 0)),
                      _const_spec((1, DIM)), _const_spec((1, DIM))],
            out_specs=[_row_spec(t), _row_spec(t)],
        ),
        compiler_params=pltpu.CompilerParams(dimension_semantics=("parallel",)),
    )(xb, xa, nvec, mu)
    return hb[:nb], ha[:na]


# ------------------------------ parameter init ------------------------------
def init_gated_gcn_params(key):
    ks = jax.random.split(key, 5)

    def lin(k):
        kw, kb = jax.random.split(k)
        lim = 1.0 / (DIM ** 0.5)
        w = jax.random.uniform(kw, (DIM, DIM), jnp.float32, -lim, lim)
        b = jax.random.uniform(kb, (1, DIM), jnp.float32, -lim, lim)
        return w, b

    w_self, b_self = lin(ks[0])
    w_nbr, b_nbr = lin(ks[1])
    w_A, b_A = lin(ks[2])
    w_B, b_B = lin(ks[3])
    w_C, b_C = lin(ks[4])
    ones = jnp.ones((1, DIM), jnp.float32)
    zeros = jnp.zeros((1, DIM), jnp.float32)
    return dict(w_self=w_self, b_self=b_self, w_nbr=w_nbr, b_nbr=b_nbr,
                w_A=w_A, b_A=b_A, w_B=w_B, b_B=b_B, w_C=w_C, b_C=b_C,
                ln_x_g=ones, ln_x_b=zeros, ln_e_g=ones, ln_e_b=zeros)


def init_processor_params(key, num_convs):
    k_a, k_g = jax.random.split(key)
    return {
        "bnd_ang": [init_gated_gcn_params(k) for k in jax.random.split(k_a, num_convs)],
        "atm_bnd": [init_gated_gcn_params(k) for k in jax.random.split(k_g, num_convs)],
    }


def init_encoder_params(key):
    k1, k2, k3, k4 = jax.random.split(key, 4)
    w1 = jax.random.normal(k1, (NUM_SPECIES, DIM), jnp.float32) * 0.1
    b1 = jax.random.normal(k2, (1, DIM), jnp.float32) * 0.01
    w2 = jax.random.normal(k3, (DIM, DIM), jnp.float32) * 0.05
    b2 = jax.random.normal(k4, (1, DIM), jnp.float32) * 0.01
    return (w1, b1, w2, b2,
            jnp.ones((1, DIM), jnp.float32), jnp.zeros((1, DIM), jnp.float32))


# ----------------------------- pure-JAX reference ---------------------------
def _gated_gcn_ref(x, edge_index, e, p):
    hp = jax.lax.Precision.HIGHEST
    src, dst = edge_index[0], edge_index[1]
    lin = lambda a, w, b: jnp.dot(a, w, precision=hp) + b

    def ln(h, g, bb):
        mu = h.mean(-1, keepdims=True)
        var = ((h - mu) ** 2).mean(-1, keepdims=True)
        return (h - mu) * jax.lax.rsqrt(var + LN_EPS) * g + bb

    silu = lambda z: z * jax.nn.sigmoid(z)
    e_hat = (lin(x[dst], p["w_A"], p["b_A"]) + lin(x[src], p["w_B"], p["b_B"])
             + lin(e, p["w_C"], p["b_C"]))
    e_new = e + silu(ln(e_hat, p["ln_e_g"], p["ln_e_b"]))
    sigma = jax.nn.sigmoid(e_hat)
    msg = sigma * lin(x, p["w_nbr"], p["b_nbr"])[src]
    num = jax.ops.segment_sum(msg, dst, num_segments=x.shape[0])
    den = jax.ops.segment_sum(sigma, dst, num_segments=x.shape[0])
    x_new = x + silu(ln(lin(x, p["w_self"], p["b_self"]) + num / (den + AGG_EPS),
                        p["ln_x_g"], p["ln_x_b"]))
    return x_new, e_new


def _processor_ref(data, params, num_convs):
    h_atm, h_bnd, h_ang = data["h_atm"], data["h_bnd"], data["h_ang"]
    for i in range(num_convs):
        h_bnd, h_ang = _gated_gcn_ref(h_bnd, data["edge_index_A"], h_ang,
                                      params["bnd_ang"][i])
        h_atm, h_bnd = _gated_gcn_ref(h_atm, data["edge_index_G"], h_bnd,
                                      params["atm_bnd"][i])
    return h_atm, h_bnd, h_ang


# ----------------------------------- demo -----------------------------------
if __name__ == "__main__":
    key = jax.random.PRNGKey(0)
    k_sp, k_bnd, k_ang, k_eg, k_ea, k_enc, k_proc = jax.random.split(key, 7)

    n_atm, n_bnd, n_ang = 16, 48, 96
    num_convs = 2

    species = jax.random.randint(k_sp, (n_atm,), 0, NUM_SPECIES)
    x_bnd = jax.random.uniform(k_bnd, (n_bnd,), jnp.float32, 0.5, CUTOFF)
    x_ang = jax.random.uniform(k_ang, (n_ang,), jnp.float32, 0.0, jnp.pi)
    edge_index_G = jax.random.randint(k_eg, (2, n_bnd), 0, n_atm)   # atoms<-bonds
    edge_index_A = jax.random.randint(k_ea, (2, n_ang), 0, n_bnd)   # bonds<-angles

    # Build the Processor inputs with the (improved) Encoder kernels.
    enc_params = init_encoder_params(k_enc)
    h_atm = embed_atm(species, *enc_params)
    h_bnd, h_ang = embed_bnd_ang(x_bnd, x_ang, CUTOFF)

    data = {"h_atm": h_atm, "h_bnd": h_bnd, "h_ang": h_ang,
            "edge_index_G": edge_index_G, "edge_index_A": edge_index_A}
    proc_params = init_processor_params(k_proc, num_convs)

    run = jax.jit(functools.partial(processor_forward, num_convs=num_convs))
    out = run(data, proc_params)
    jax.block_until_ready(out)

    assert out["h_atm"].shape == (n_atm, DIM)
    assert out["h_bnd"].shape == (n_bnd, DIM)
    assert out["h_ang"].shape == (n_ang, DIM)

    # Correctness vs a pure-JAX reference of the same GatedGCN stack.
    ref_atm, ref_bnd, ref_ang = _processor_ref(data, proc_params, num_convs)
    assert bool(jnp.isfinite(out["h_atm"]).all())
    assert bool(jnp.allclose(out["h_atm"], ref_atm, rtol=5e-3, atol=5e-3))
    assert bool(jnp.allclose(out["h_bnd"], ref_bnd, rtol=5e-3, atol=5e-3))
    assert bool(jnp.allclose(out["h_ang"], ref_ang, rtol=5e-3, atol=5e-3))

    print("KERNEL_OK")
</pallas_src>

<mosaic_0001>
module attributes {stable_mosaic.version = 11 : i64} {
  func.func @_atom_kernel(%arg0: i32, %arg1: memref<8x1xi32, #tpu.memory_space<vmem>>, %arg2: memref<4x128xf32, #tpu.memory_space<vmem>>, %arg3: memref<1x128xf32, #tpu.memory_space<vmem>>, %arg4: memref<128x128xf32, #tpu.memory_space<vmem>>, %arg5: memref<1x128xf32, #tpu.memory_space<vmem>>, %arg6: memref<1x128xf32, #tpu.memory_space<vmem>>, %arg7: memref<1x128xf32, #tpu.memory_space<vmem>>, %arg8: memref<8x128xf32, #tpu.memory_space<vmem>>) attributes {dimension_semantics = [#tpu.dimension_semantics<parallel>], iteration_bounds = array<i64: 2>, scalar_prefetch = 0 : i64, scratch_operands = 0 : i64, tpu.core_type = #tpu.core_type<tc>, window_params = [{transform_indices = @transform_0, window_bounds = array<i64: 8, 1>}, {pipeline_mode = #tpu.pipeline_mode<synchronous>, transform_indices = @transform_1, window_bounds = array<i64: 4, 128>}, {pipeline_mode = #tpu.pipeline_mode<synchronous>, transform_indices = @transform_2, window_bounds = array<i64: 1, 128>}, {pipeline_mode = #tpu.pipeline_mode<synchronous>, transform_indices = @transform_3, window_bounds = array<i64: 128, 128>}, {pipeline_mode = #tpu.pipeline_mode<synchronous>, transform_indices = @transform_4, window_bounds = array<i64: 1, 128>}, {pipeline_mode = #tpu.pipeline_mode<synchronous>, transform_indices = @transform_5, window_bounds = array<i64: 1, 128>}, {pipeline_mode = #tpu.pipeline_mode<synchronous>, transform_indices = @transform_6, window_bounds = array<i64: 1, 128>}, {transform_indices = @transform_7, window_bounds = array<i64: 8, 128>}]} {
    %c0 = arith.constant 0 : index
    %c0_0 = arith.constant 0 : index
    %0 = vector.load %arg1[%c0, %c0_0] : memref<8x1xi32, #tpu.memory_space<vmem>>, vector<8x1xi32>
    %c0_1 = arith.constant 0 : index
    %c0_2 = arith.constant 0 : index
    %1 = vector.load %arg2[%c0_1, %c0_2] : memref<4x128xf32, #tpu.memory_space<vmem>>, vector<4x128xf32>
    %cst = arith.constant 0.000000e+00 : f32
    %2 = vector.broadcast %cst : f32 to vector<8x128xf32>
    %c0_i32 = arith.constant 0 : i32
    %3 = vector.broadcast %c0_i32 : i32 to vector<8x1xi32>
    %4 = arith.cmpi eq, %0, %3 : vector<8x1xi32>
    %cst_3 = arith.constant 1.000000e+00 : f32
    %cst_4 = arith.constant 0.000000e+00 : f32
    %5 = vector.broadcast %cst_3 : f32 to vector<8x1xf32>
    %6 = vector.broadcast %cst_4 : f32 to vector<8x1xf32>
    %7 = arith.select %4, %5, %6 : vector<8x1xi1>, vector<8x1xf32>
    %8 = vector.extract_strided_slice %1 {offsets = [0, 0], sizes = [1, 128], strides = [1, 1]} : vector<4x128xf32> to vector<1x128xf32>
    %9 = vector.broadcast %7 : vector<8x1xf32> to vector<8x128xf32>
    %10 = vector.broadcast %8 : vector<1x128xf32> to vector<8x128xf32>
    %11 = arith.mulf %9, %10 : vector<8x128xf32>
    %12 = arith.addf %2, %11 : vector<8x128xf32>
    %c1_i32 = arith.constant 1 : i32
    %13 = vector.broadcast %c1_i32 : i32 to vector<8x1xi32>
    %14 = arith.cmpi eq, %0, %13 : vector<8x1xi32>
    %cst_5 = arith.constant 1.000000e+00 : f32
    %cst_6 = arith.constant 0.000000e+00 : f32
    %15 = vector.broadcast %cst_5 : f32 to vector<8x1xf32>
    %16 = vector.broadcast %cst_6 : f32 to vector<8x1xf32>
    %17 = arith.select %14, %15, %16 : vector<8x1xi1>, vector<8x1xf32>
    %18 = vector.extract_strided_slice %1 {offsets = [1, 0], sizes = [1, 128], strides = [1, 1]} : vector<4x128xf32> to vector<1x128xf32>
    %19 = vector.broadcast %17 : vector<8x1xf32> to vector<8x128xf32>
    %20 = vector.broadcast %18 : vector<1x128xf32> to vector<8x128xf32>
    %21 = arith.mulf %19, %20 : vector<8x128xf32>
    %22 = arith.addf %12, %21 : vector<8x128xf32>
    %c2_i32 = arith.constant 2 : i32
    %23 = vector.broadcast %c2_i32 : i32 to vector<8x1xi32>
    %24 = arith.cmpi eq, %0, %23 : vector<8x1xi32>
    %cst_7 = arith.constant 1.000000e+00 : f32
    %cst_8 = arith.constant 0.000000e+00 : f32
    %25 = vector.broadcast %cst_7 : f32 to vector<8x1xf32>
    %26 = vector.broadcast %cst_8 : f32 to vector<8x1xf32>
    %27 = arith.select %24, %25, %26 : vector<8x1xi1>, vector<8x1xf32>
    %28 = vector.extract_strided_slice %1 {offsets = [2, 0], sizes = [1, 128], strides = [1, 1]} : vector<4x128xf32> to vector<1x128xf32>
    %29 = vector.broadcast %27 : vector<8x1xf32> to vector<8x128xf32>
    %30 = vector.broadcast %28 : vector<1x128xf32> to vector<8x128xf32>
    %31 = arith.mulf %29, %30 : vector<8x128xf32>
    %32 = arith.addf %22, %31 : vector<8x128xf32>
    %c3_i32 = arith.constant 3 : i32
    %33 = vector.broadcast %c3_i32 : i32 to vector<8x1xi32>
    %34 = arith.cmpi eq, %0, %33 : vector<8x1xi32>
    %cst_9 = arith.constant 1.000000e+00 : f32
    %cst_10 = arith.constant 0.000000e+00 : f32
    %35 = vector.broadcast %cst_9 : f32 to vector<8x1xf32>
    %36 = vector.broadcast %cst_10 : f32 to vector<8x1xf32>
    %37 = arith.select %34, %35, %36 : vector<8x1xi1>, vector<8x1xf32>
    %38 = vector.extract_strided_slice %1 {offsets = [3, 0], sizes = [1, 128], strides = [1, 1]} : vector<4x128xf32> to vector<1x128xf32>
    %39 = vector.broadcast %37 : vector<8x1xf32> to vector<8x128xf32>
    %40 = vector.broadcast %38 : vector<1x128xf32> to vector<8x128xf32>
    %41 = arith.mulf %39, %40 : vector<8x128xf32>
    %42 = arith.addf %32, %41 : vector<8x128xf32>
    %c0_11 = arith.constant 0 : index
    %c0_12 = arith.constant 0 : index
    %43 = vector.load %arg3[%c0_11, %c0_12] : memref<1x128xf32, #tpu.memory_space<vmem>>, vector<1x128xf32>
    %44 = vector.broadcast %43 : vector<1x128xf32> to vector<8x128xf32>
    %45 = arith.addf %42, %44 : vector<8x128xf32>
    %46 = arith.negf %45 : vector<8x128xf32>
    %47 = math.exp %46 : vector<8x128xf32>
    %cst_13 = arith.constant 1.000000e+00 : f32
    %48 = vector.broadcast %cst_13 : f32 to vector<8x128xf32>
    %49 = arith.addf %48, %47 : vector<8x128xf32>
    %50 = arith.divf %48, %49 : vector<8x128xf32>
    %51 = arith.mulf %45, %50 : vector<8x128xf32>
    %c0_14 = arith.constant 0 : index
    %c0_15 = arith.constant 0 : index
    %52 = vector.load %arg4[%c0_14, %c0_15] : memref<128x128xf32, #tpu.memory_space<vmem>>, vector<128x128xf32>
    %cst_16 = arith.constant dense<0.000000e+00> : vector<8x128xf32>
    %53 = tpu.matmul %51, %52, %cst_16 {dimension_numbers = #tpu.dot_dimension_numbers<[1], [0], [0], [1], [0, 0, 1, 1], [], []>} : vector<8x128xf32>, vector<128x128xf32>, vector<8x128xf32> -> vector<8x128xf32>
    %c0_17 = arith.constant 0 : index
    %c0_18 = arith.constant 0 : index
    %54 = vector.load %arg5[%c0_17, %c0_18] : memref<1x128xf32, #tpu.memory_space<vmem>>, vector<1x128xf32>
    %55 = vector.broadcast %54 : vector<1x128xf32> to vector<8x128xf32>
    %56 = arith.addf %53, %55 : vector<8x128xf32>
    %c0_19 = arith.constant 0 : index
    %c0_20 = arith.constant 0 : index
    %57 = vector.load %arg6[%c0_19, %c0_20] : memref<1x128xf32, #tpu.memory_space<vmem>>, vector<1x128xf32>
    %c0_21 = arith.constant 0 : index
    %c0_22 = arith.constant 0 : index
    %58 = vector.load %arg7[%c0_21, %c0_22] : memref<1x128xf32, #tpu.memory_space<vmem>>, vector<1x128xf32>
    %cst_23 = arith.constant dense<0.000000e+00> : vector<8xf32>
    %59 = vector.multi_reduction <add>, %56, %cst_23 [1] : vector<8x128xf32> to vector<8xf32>
    %60 = vector.shape_cast %59 : vector<8xf32> to vector<8x1xf32>
    %cst_24 = arith.constant 1.280000e+02 : f32
    %61 = vector.broadcast %cst_24 : f32 to vector<8x1xf32>
    %62 = arith.divf %60, %61 : vector<8x1xf32>
    %63 = vector.broadcast %62 : vector<8x1xf32> to vector<8x128xf32>
    %64 = arith.subf %56, %63 : vector<8x128xf32>
    %65 = arith.mulf %64, %64 : vector<8x128xf32>
    %cst_25 = arith.constant dense<0.000000e+00> : vector<8xf32>
    %66 = vector.multi_reduction <add>, %65, %cst_25 [1] : vector<8x128xf32> to vector<8xf32>
    %67 = vector.shape_cast %66 : vector<8xf32> to vector<8x1xf32>
    %cst_26 = arith.constant 1.280000e+02 : f32
    %68 = vector.broadcast %cst_26 : f32 to vector<8x1xf32>
    %69 = arith.divf %67, %68 : vector<8x1xf32>
    %70 = vector.broadcast %62 : vector<8x1xf32> to vector<8x128xf32>
    %71 = arith.subf %56, %70 : vector<8x128xf32>
    %cst_27 = arith.constant 9.99999974E-6 : f32
    %72 = vector.broadcast %cst_27 : f32 to vector<8x1xf32>
    %73 = arith.addf %69, %72 : vector<8x1xf32>
    %74 = math.rsqrt %73 : vector<8x1xf32>
    %75 = vector.broadcast %74 : vector<8x1xf32> to vector<8x128xf32>
    %76 = arith.mulf %71, %75 : vector<8x128xf32>
    %77 = vector.broadcast %57 : vector<1x128xf32> to vector<8x128xf32>
    %78 = arith.mulf %76, %77 : vector<8x128xf32>
    %79 = vector.broadcast %58 : vector<1x128xf32> to vector<8x128xf32>
    %80 = arith.addf %78, %79 : vector<8x128xf32>
    %c0_28 = arith.constant 0 : index
    %c0_29 = arith.constant 0 : index
    %81 = vector.load %arg8[%c0_28, %c0_29] : memref<8x128xf32, #tpu.memory_space<vmem>>, vector<8x128xf32>
    tpu.vector_store %arg8[%c0_28, %c0_29], %80 {strides = array<i32>} : memref<8x128xf32, #tpu.memory_space<vmem>>, vector<8x128xf32>,
    return
  }
  func.func @transform_0(%arg0: i32) -> (i32, i32) {
    %c0_i32 = arith.constant 0 : i32
    %c0_i32_0 = arith.constant 0 : i32
    return %arg0, %c0_i32 : i32, i32
  }
  func.func @transform_1(%arg0: i32) -> (i32, i32) {
    %c0_i32 = arith.constant 0 : i32
    %c0_i32_0 = arith.constant 0 : i32
    %c0_i32_1 = arith.constant 0 : i32
    return %c0_i32, %c0_i32_0 : i32, i32
  }
  func.func @transform_2(%arg0: i32) -> (i32, i32) {
    %c0_i32 = arith.constant 0 : i32
    %c0_i32_0 = arith.constant 0 : i32
    %c0_i32_1 = arith.constant 0 : i32
    return %c0_i32, %c0_i32_0 : i32, i32
  }
  func.func @transform_3(%arg0: i32) -> (i32, i32) {
    %c0_i32 = arith.constant 0 : i32
    %c0_i32_0 = arith.constant 0 : i32
    %c0_i32_1 = arith.constant 0 : i32
    return %c0_i32, %c0_i32_0 : i32, i32
  }
  func.func @transform_4(%arg0: i32) -> (i32, i32) {
    %c0_i32 = arith.constant 0 : i32
    %c0_i32_0 = arith.constant 0 : i32
    %c0_i32_1 = arith.constant 0 : i32
    return %c0_i32, %c0_i32_0 : i32, i32
  }
  func.func @transform_5(%arg0: i32) -> (i32, i32) {
    %c0_i32 = arith.constant 0 : i32
    %c0_i32_0 = arith.constant 0 : i32
    %c0_i32_1 = arith.constant 0 : i32
    return %c0_i32, %c0_i32_0 : i32, i32
  }
  func.func @transform_6(%arg0: i32) -> (i32, i32) {
    %c0_i32 = arith.constant 0 : i32
    %c0_i32_0 = arith.constant 0 : i32
    %c0_i32_1 = arith.constant 0 : i32
    return %c0_i32, %c0_i32_0 : i32, i32
  }
  func.func @transform_7(%arg0: i32) -> (i32, i32) {
    %c0_i32 = arith.constant 0 : i32
    %c0_i32_0 = arith.constant 0 : i32
    return %arg0, %c0_i32 : i32, i32
  }
}

</mosaic_0001>

<llo_original>
// kernel: tpu_custom_call.1
$region0: #{tpu_custom_call.1}
  #allocation0 [shape = 'u32[]', space=smem, size = 0x4, offset = 0x4, fixed_abs, tag = 'smem constant byte address 0x4 - core index']
  #allocation1 [shape = 'u32[144,128]{1,0:T(1,128)}', space=vmem, size = 0x12000, scoped, tag = 'internal scratch']
  %s0 = inlined_call_operand.vmem [shape: s32[16,1], index: 0, kind: input, shape index: {}]
  %s1 = inlined_call_operand.vmem [shape: f32[4,128], index: 1, kind: input, shape index: {}]
  %s2 = inlined_call_operand.vmem [shape: f32[1,128], index: 2, kind: input, shape index: {}]
  %s3 = inlined_call_operand.hbm [shape: f32[128,128], index: 3, kind: input, shape index: {}]
  %s4 = inlined_call_operand.vmem [shape: f32[1,128], index: 4, kind: input, shape index: {}]
  %s5 = inlined_call_operand.vmem [shape: f32[1,128], index: 5, kind: input, shape index: {}]
  %s6 = inlined_call_operand.vmem [shape: f32[1,128], index: 6, kind: input, shape index: {}]
  %s7 = inlined_call_operand.hbm [shape: f32[16,128], index: 7, kind: output, shape index: {}]
  %s8 = sld [smem:[#allocation0]]
  $region65: #{tpu_custom_call.1} parent=0
    _
  %s10 = ssub.s32 1, %s8
  %s11 = scalar_select 0, %s10, %s8
  $region1: #{tpu_custom_call.1} parent=0
    #allocation2 [shape = 'u8[65536]{0}', space=vmem, size = 0x10000, scoped, tag = 'input window, operand 3, single buffered']
    #allocation3 [shape = 's32[2]{0}', space=sflag, size = 0x8, scoped, tag = 'scoped memory for tpu_custom_call.1']
    #allocation4 [shape = 's32[2]{0}', space=sflag, size = 0x8, scoped, tag = 'scoped memory for tpu_custom_call.1']
    #allocation5 [shape = 'u8[8192]{0}', space=vmem, size = 0x2000, scoped, tag = 'output window, operand 0']
    %12 = vsyncpa [#allocation3], 0
    %13 = vsyncpa [#allocation4], 0
    %s14 = scalar_lea.sflag [#allocation4], 1
    %15 = vsyncpa %s14, 0
    loop: start=0, step=1, limit=4
    $region2: #{tpu_custom_call.1} parent=1 // loop_pre_header
      _
    $region3: #{tpu_custom_call.1} parent=1 // loop_header
      %s17 = sphi 0, %s21
      %p18 = scmp.ge.s32.totalorder %s17, 4
      %s27 = sphi 0, %s29
      %s30 = sphi 0, %s27
      %s31 = sphi 0, %s30
      %s47 = sphi 0, %s31
      %s51 = sphi 0, %s51
      %s53 = sphi 0, %s51
      %s54 = sphi 0, %s53
      %s68 = sphi 0, %s54
      %s72 = sphi 0, %s72
      %s74 = sphi 0, %s72
      %s75 = sphi 0, %s74
      %s89 = sphi 0, %s75
      %s93 = sphi 0, %s93
      %s95 = sphi 0, %s93
      %s96 = sphi 0, %s95
      %s110 = sphi 0, %s96
      %s114 = sphi 0, %s114
      %s116 = sphi 0, %s114
      %s117 = sphi 0, %s116
      %s131 = sphi 0, %s117
      %s135 = sphi 0, %s135
      %s137 = sphi 0, %s135
      %s138 = sphi 0, %s137
      %s152 = sphi 0, %s138
      %s156 = sphi 0, %s156
      %s158 = sphi 0, %s156
      %s159 = sphi 0, %s158
      %s173 = sphi 0, %s159
      %s179 = sphi 0, %s181
      %s182 = sphi 0, %s179
      %s183 = sphi 0, %s182
      %s199 = sphi 0, %s183
    $region4: #{tpu_custom_call.1} parent=1 // loop_header_branch
      %20 = sbr.rel (%p18) target = $region8
    $region5: #{tpu_custom_call.1} parent=1 // loop_body
      %s22 = ssub.s32 %s17, 1
      %s23 = ssub.s32 %s17, 2
      %s24 = sadd.s32 %s17, 1
      %s25 = ssub.s32 %s17, %s24
      %p26 = scmp.eq.s32.totalorder %s25, 0
      %s28 = sadd.s32 %s27, 1
      %s29 = scalar_select %p26, %s27, %s28
      %p32 = pneg %p26
      %p33 = scmp.eq.s32.totalorder %s17, 1
      %p34 = por %p32, %p33
      %p35 = scmp.ne.s32.totalorder %s27, %s30
      %p36 = scmp.eq.s32.totalorder %s17, 0
      %p37 = por %p35, %p36
      %p38 = scmp.ne.s32.totalorder %s27, %s30
      %p39 = scmp.eq.s32.totalorder %s22, 1
      %p40 = por %p38, %p39
      %p41 = scmp.ne.s32.totalorder %s30, %s31
      %p42 = scmp.eq.s32.totalorder %s22, 0
      %p43 = por %p41, %p42
      %p44 = scmp.ne.s32.totalorder %s30, %s31
      %p45 = scmp.eq.s32.totalorder %s23, 1
      %p46 = por %p44, %p45
      %p48 = scmp.ne.s32.totalorder %s31, %s47
      %p49 = scmp.eq.s32.totalorder %s23, 0
      %p50 = por %p48, %p49
      %s52 = sadd.s32 %s51, 1
      %p55 = scmp.eq.s32.totalorder %s17, 1
      %p56 = scmp.ne.s32.totalorder %s51, %s53
      %p57 = scmp.eq.s32.totalorder %s17, 0
      %p58 = por %p56, %p57
      %p59 = scmp.ne.s32.totalorder %s51, %s53
      %p60 = scmp.eq.s32.totalorder %s22, 1
      %p61 = por %p59, %p60
      %p62 = scmp.ne.s32.totalorder %s53, %s54
      %p63 = scmp.eq.s32.totalorder %s22, 0
      %p64 = por %p62, %p63
      %p65 = scmp.ne.s32.totalorder %s53, %s54
      %p66 = scmp.eq.s32.totalorder %s23, 1
      %p67 = por %p65, %p66
      %p69 = scmp.ne.s32.totalorder %s54, %s68
      %p70 = scmp.eq.s32.totalorder %s23, 0
      %p71 = por %p69, %p70
      %s73 = sadd.s32 %s72, 1
      %p76 = scmp.eq.s32.totalorder %s17, 1
      %p77 = scmp.ne.s32.totalorder %s72, %s74
      %p78 = scmp.eq.s32.totalorder %s17, 0
      %p79 = por %p77, %p78
      %p80 = scmp.ne.s32.totalorder %s72, %s74
      %p81 = scmp.eq.s32.totalorder %s22, 1
      %p82 = por %p80, %p81
      %p83 = scmp.ne.s32.totalorder %s74, %s75
      %p84 = scmp.eq.s32.totalorder %s22, 0
      %p85 = por %p83, %p84
      %p86 = scmp.ne.s32.totalorder %s74, %s75
      %p87 = scmp.eq.s32.totalorder %s23, 1
      %p88 = por %p86, %p87
      %p90 = scmp.ne.s32.totalorder %s75, %s89
      %p91 = scmp.eq.s32.totalorder %s23, 0
      %p92 = por %p90, %p91
      %s94 = sadd.s32 %s93, 1
      %p97 = scmp.eq.s32.totalorder %s17, 1
      %p98 = scmp.ne.s32.totalorder %s93, %s95
      %p99 = scmp.eq.s32.totalorder %s17, 0
      %p100 = por %p98, %p99
      %p101 = scmp.ne.s32.totalorder %s93, %s95
      %p102 = scmp.eq.s32.totalorder %s22, 1
      %p103 = por %p101, %p102
      %p104 = scmp.ne.s32.totalorder %s95, %s96
      %p105 = scmp.eq.s32.totalorder %s22, 0
      %p106 = por %p104, %p105
      %p107 = scmp.ne.s32.totalorder %s95, %s96
      %p108 = scmp.eq.s32.totalorder %s23, 1
      %p109 = por %p107, %p108
      %p111 = scmp.ne.s32.totalorder %s96, %s110
      %p112 = scmp.eq.s32.totalorder %s23, 0
      %p113 = por %p111, %p112
      %s115 = sadd.s32 %s114, 1
      %p118 = scmp.eq.s32.totalorder %s17, 1
      %p119 = scmp.ne.s32.totalorder %s114, %s116
      %p120 = scmp.eq.s32.totalorder %s17, 0
      %p121 = por %p119, %p120
      %p122 = scmp.ne.s32.totalorder %s114, %s116
      %p123 = scmp.eq.s32.totalorder %s22, 1
      %p124 = por %p122, %p123
      %p125 = scmp.ne.s32.totalorder %s116, %s117
      %p126 = scmp.eq.s32.totalorder %s22, 0
      %p127 = por %p125, %p126
      %p128 = scmp.ne.s32.totalorder %s116, %s117
      %p129 = scmp.eq.s32.totalorder %s23, 1
      %p130 = por %p128, %p129
      %p132 = scmp.ne.s32.totalorder %s117, %s131
      %p133 = scmp.eq.s32.totalorder %s23, 0
      %p134 = por %p132, %p133
      %s136 = sadd.s32 %s135, 1
      %p139 = scmp.eq.s32.totalorder %s17, 1
      %p140 = scmp.ne.s32.totalorder %s135, %s137
      %p141 = scmp.eq.s32.totalorder %s17, 0
      %p142 = por %p140, %p141
      %p143 = scmp.ne.s32.totalorder %s135, %s137
      %p144 = scmp.eq.s32.totalorder %s22, 1
      %p145 = por %p143, %p144
      %p146 = scmp.ne.s32.totalorder %s137, %s138
      %p147 = scmp.eq.s32.totalorder %s22, 0
      %p148 = por %p146, %p147
      %p149 = scmp.ne.s32.totalorder %s137, %s138
      %p150 = scmp.eq.s32.totalorder %s23, 1
      %p151 = por %p149, %p150
      %p153 = scmp.ne.s32.totalorder %s138, %s152
      %p154 = scmp.eq.s32.totalorder %s23, 0
      %p155 = por %p153, %p154
      %s157 = sadd.s32 %s156, 1
      %p160 = scmp.eq.s32.totalorder %s17, 1
      %p161 = scmp.ne.s32.totalorder %s156, %s158
      %p162 = scmp.eq.s32.totalorder %s17, 0
      %p163 = por %p161, %p162
      %p164 = scmp.ne.s32.totalorder %s156, %s158
      %p165 = scmp.eq.s32.totalorder %s22, 1
      %p166 = por %p164, %p165
      %p167 = scmp.ne.s32.totalorder %s158, %s159
      %p168 = scmp.eq.s32.totalorder %s22, 0
      %p169 = por %p167, %p168
      %p170 = scmp.ne.s32.totalorder %s158, %s159
      %p171 = scmp.eq.s32.totalorder %s23, 1
      %p172 = por %p170, %p171
      %p174 = scmp.ne.s32.totalorder %s159, %s173
      %p175 = scmp.eq.s32.totalorder %s23, 0
      %p176 = por %p174, %p175
      %s177 = ssub.s32 %s17, %s24
      %p178 = scmp.eq.s32.totalorder %s177, 0
      %s180 = sadd.s32 %s179, 1
      %s181 = scalar_select %p178, %s179, %s180
      %p184 = pneg %p178
      %p185 = scmp.eq.s32.totalorder %s17, 1
      %p186 = por %p184, %p185
      %p187 = scmp.ne.s32.totalorder %s179, %s182
      %p188 = scmp.eq.s32.totalorder %s17, 0
      %p189 = por %p187, %p188
      %p190 = scmp.ne.s32.totalorder %s179, %s182
      %p191 = scmp.eq.s32.totalorder %s22, 1
      %p192 = por %p190, %p191
      %p193 = scmp.ne.s32.totalorder %s182, %s183
      %p194 = scmp.eq.s32.totalorder %s22, 0
      %p195 = por %p193, %p194
      %p196 = scmp.ne.s32.totalorder %s182, %s183
      %p197 = scmp.eq.s32.totalorder %s23, 1
      %p198 = por %p196, %p197
      %p200 = scmp.ne.s32.totalorder %s183, %s199
      %p201 = scmp.eq.s32.totalorder %s23, 0
      %p202 = por %p200, %p201
      %p203 = scmp.le.s32.totalorder 1, %s17
      %p204 = scmp.lt.s32.totalorder %s17, 3
      %p205 = pnand %p203, %p204
      %p206 = pneg %p205
      // Predicated region
      $region9: #{tpu_custom_call.1} parent=5 // pred_check
        _
      $region10: #{tpu_custom_call.1} parent=5 // pred_check_branch
        %208 = sbr.rel (%p205) target = $region12
      $region11: #{tpu_custom_call.1} parent=5 // pred_region
        %s209 = ssub.s32 %s17, 1
        // Predicated region
        $region13: #{tpu_custom_call.1} parent=11 // pred_check
          %p210 = pneg %p64
        $region14: #{tpu_custom_call.1} parent=11 // pred_check_branch
          %212 = sbr.rel (%p210) target = $region16
        $region15: #{tpu_custom_call.1} parent=11 // pred_region
          _
        $region16: #{tpu_custom_call.1} parent=11 // pred_fallthru
          _
        // Predicated region
        $region17: #{tpu_custom_call.1} parent=11 // pred_check
          %p213 = pneg %p85
        $region18: #{tpu_custom_call.1} parent=11 // pred_check_branch
          %215 = sbr.rel (%p213) target = $region20
        $region19: #{tpu_custom_call.1} parent=11 // pred_region
          _
        $region20: #{tpu_custom_call.1} parent=11 // pred_fallthru
          _
        // Predicated region
        $region21: #{tpu_custom_call.1} parent=11 // pred_check
          %p216 = pneg %p106
        $region22: #{tpu_custom_call.1} parent=11 // pred_check_branch
          %218 = sbr.rel (%p216) target = $region24
        $region23: #{tpu_custom_call.1} parent=11 // pred_region
          %s220 = ssub.s32 2048, 2048
          %221 = vsyncadd [#allocation3], %s220
          %s222 = sshll.u32 [#allocation2], 4
          %s223 = int_to_ptr.vmem [resolvable:$true] %s222
          %228 = dma.hbm_to_vmem [thread:$0]  %s3, 2048, %s223, [#allocation3], 128, 128, 8
        $region24: #{tpu_custom_call.1} parent=11 // pred_fallthru
          _
        // Predicated region
        $region25: #{tpu_custom_call.1} parent=11 // pred_check
          %p229 = pneg %p127
        $region26: #{tpu_custom_call.1} parent=11 // pred_check_branch
          %231 = sbr.rel (%p229) target = $region28
        $region27: #{tpu_custom_call.1} parent=11 // pred_region
          _
        $region28: #{tpu_custom_call.1} parent=11 // pred_fallthru
          _
        // Predicated region
        $region29: #{tpu_custom_call.1} parent=11 // pred_check
          %p232 = pneg %p148
        $region30: #{tpu_custom_call.1} parent=11 // pred_check_branch
          %234 = sbr.rel (%p232) target = $region32
        $region31: #{tpu_custom_call.1} parent=11 // pred_region
          _
        $region32: #{tpu_custom_call.1} parent=11 // pred_fallthru
          _
        // Predicated region
        $region33: #{tpu_custom_call.1} parent=11 // pred_check
          %p235 = pneg %p169
        $region34: #{tpu_custom_call.1} parent=11 // pred_check_branch
          %237 = sbr.rel (%p235) target = $region36
        $region35: #{tpu_custom_call.1} parent=11 // pred_region
          _
        $region36: #{tpu_custom_call.1} parent=11 // pred_fallthru
          _
      $region12: #{tpu_custom_call.1} parent=5 // pred_fallthru
        _
      %p238 = scmp.lt.s32.totalorder %s17, 2
      // Predicated region
      $region37: #{tpu_custom_call.1} parent=5 // pred_check
        %p239 = pneg %p238
      $region38: #{tpu_custom_call.1} parent=5 // pred_check_branch
        %241 = sbr.rel (%p239) target = $region40
      $region39: #{tpu_custom_call.1} parent=5 // pred_region
        // Predicated region
        $region41: #{tpu_custom_call.1} parent=39 // pred_check
          %p242 = pneg %p37
        $region42: #{tpu_custom_call.1} parent=39 // pred_check_branch
          %244 = sbr.rel (%p242) target = $region44
        $region43: #{tpu_custom_call.1} parent=39 // pred_region
          %p245 = scmp.lt.s32.totalorder %s17, 1
          %s246 = scalar_select %p245, %s17, 1
          %s247 = smul.addr %s246, 8
          %s248 = scalar_lea.vmem %s0, %s247
        $region44: #{tpu_custom_call.1} parent=39 // pred_fallthru
          _
      $region40: #{tpu_custom_call.1} parent=5 // pred_fallthru
        _
      %p249 = scmp.le.s32.totalorder 1, %s17
      %p250 = scmp.lt.s32.totalorder %s17, 3
      %p251 = pnand %p249, %p250
      %p252 = pneg %p251
      // Predicated region
      $region45: #{tpu_custom_call.1} parent=5 // pred_check
        _
      $region46: #{tpu_custom_call.1} parent=5 // pred_check_branch
        %254 = sbr.rel (%p251) target = $region48
      $region47: #{tpu_custom_call.1} parent=5 // pred_region
        %s255 = ssub.s32 %s17, 1
        // Predicated region
        $region49: #{tpu_custom_call.1} parent=47 // pred_check
          %p256 = pneg %p106
        $region50: #{tpu_custom_call.1} parent=47 // pred_check_branch
          %258 = sbr.rel (%p256) target = $region52
        $region51: #{tpu_custom_call.1} parent=47 // pred_region
          %259 = dma.done [#allocation3], 2048
        $region52: #{tpu_custom_call.1} parent=47 // pred_fallthru
          _
        %p260 = scmp.lt.s32.totalorder %s22, 1
        %s261 = scalar_select %p260, %s22, 1
        %s262 = smul.addr %s261, 8
        %s263 = scalar_lea.vmem %s0, %s262
        %p264 = pneg %p43
        %p265 = pneg %p40
        %p266 = pneg %p64
        %p267 = pneg %p61
        %p268 = pneg %p85
        %p269 = pneg %p82
        %p270 = pneg %p106
        %p271 = pneg %p103
        %p272 = pneg %p127
        %p273 = pneg %p124
        %p274 = pneg %p148
        %p275 = pneg %p145
        %p276 = pneg %p169
        %p277 = pneg %p166
        %p278 = pneg %p195
        %p279 = pneg %p192
        %s280 = sand.u32 %s182, 1
        %s281 = scalar_lea.sflag [#allocation4], %s280
        %s282 = sand.u32 %s182, 1
        %s283 = smul.addr %s282, 8
        %s284 = scalar_lea.vmem [#allocation5], %s283
        %p285 = scmp.lt.s32.totalorder %s22, 1
        %s286 = scalar_select %p285, %s22, 1
        %s287 = smul.addr %s286, 8
        %s288 = scalar_lea.vmem %s0, %s287
        %v289 = vld [vmem:[%s288] sm:$0xff]
        %v290 = vld [vmem:[%s1] sm:$0xf]
        %vm291 = vcmp.eq.s32.totalorder %v289, 0
        %v292 = vsel %vm291, 1.0, 0.0
        %294 = vset.pattern.permute.xlu0 0
        %295 = vperm.xlu0 %294, %v292
        %v296 = vpop.permute.xlu0 %295
        %v298 = vlaneseq
        %v299 = vshrl.u32 %v298, 7
        %v300 = vsub.s32 0, %v299
        %v301 = vrot.slane %v290, %v300
        %v302 = vmul.f32 %v296, %v301
        %v303 = vadd.f32 %v302, 0.0
        %vm304 = vcmp.eq.s32.totalorder %v289, 1
        %v305 = vsel %vm304, 1.0, 0.0
        %307 = vset.pattern.permute.xlu0 0
        %308 = vperm.xlu0 %307, %v305
        %v309 = vpop.permute.xlu0 %308
        %v311 = vlaneseq
        %v312 = vshrl.u32 %v311, 7
        %v313 = vsub.s32 1, %v312
        %v314 = vrot.slane %v290, %v313
        %v315 = vmul.f32 %v309, %v314
        %v316 = vadd.f32 %v303, %v315
        %vm317 = vcmp.eq.s32.totalorder %v289, 2
        %v318 = vsel %vm317, 1.0, 0.0
        %320 = vset.pattern.permute.xlu0 0
        %321 = vperm.xlu0 %320, %v318
        %v322 = vpop.permute.xlu0 %321
        %v324 = vlaneseq
        %v325 = vshrl.u32 %v324, 7
        %v326 = vsub.s32 2, %v325
        %v327 = vrot.slane %v290, %v326
        %v328 = vmul.f32 %v322, %v327
        %v329 = vadd.f32 %v316, %v328
        %vm330 = vcmp.eq.s32.totalorder %v289, 3
        %v331 = vsel %vm330, 1.0, 0.0
        %333 = vset.pattern.permute.xlu0 0
        %334 = vperm.xlu0 %333, %v331
        %v335 = vpop.permute.xlu0 %334
        %v337 = vlaneseq
        %v338 = vshrl.u32 %v337, 7
        %v339 = vsub.s32 3, %v338
        %v340 = vrot.slane %v290, %v339
        %v341 = vmul.f32 %v335, %v340
        %v342 = vadd.f32 %v329, %v341
        %v343 = vld [vmem:[%s2] sm:$0x1]
        %v345 = vlaneseq
        %v346 = vshrl.u32 %v345, 7
        %v347 = vsub.s32 0, %v346
        %v348 = vrot.slane %v343, %v347
        %v350 = vadd.f32 %v342, %v348
        %v351 = vxor.u32 %v350, 2147483648
        %v352 = vmul.f32 %v351, 1.442695
        %v353 = vpow.pop %v352
        %v354 = vadd.f32 %v353, 1.0
        %v355 = vrcp.pop %v354
        %v356 = vmul.f32 1.0, %v355
        %v357 = vmul.f32 %v350, %v356
        %v358 = vld [vmem:[#allocation2] sm:$0xff]
        %v359 = vld [vmem:[#allocation2 + $0x8] sm:$0xff]
        %v360 = vld [vmem:[#allocation2 + $0x10] sm:$0xff]
        %v361 = vld [vmem:[#allocation2 + $0x18] sm:$0xff]
        %v362 = vld [vmem:[#allocation2 + $0x20] sm:$0xff]
        %v363 = vld [vmem:[#allocation2 + $0x28] sm:$0xff]
        %v364 = vld [vmem:[#allocation2 + $0x30] sm:$0xff]
        %v365 = vld [vmem:[#allocation2 + $0x38] sm:$0xff]
        %v366 = vld [vmem:[#allocation2 + $0x40] sm:$0xff]
        %v367 = vld [vmem:[#allocation2 + $0x48] sm:$0xff]
        %v368 = vld [vmem:[#allocation2 + $0x50] sm:$0xff]
        %v369 = vld [vmem:[#allocation2 + $0x58] sm:$0xff]
        %v370 = vld [vmem:[#allocation2 + $0x60] sm:$0xff]
        %v371 = vld [vmem:[#allocation2 + $0x68] sm:$0xff]
        %v372 = vld [vmem:[#allocation2 + $0x70] sm:$0xff]
        %v373 = vld [vmem:[#allocation2 + $0x78] sm:$0xff]
        %v374 = vld [vmem:[%s4] sm:$0x1]
        %v376 = vlaneseq
        %v377 = vshrl.u32 %v376, 7
        %v378 = vsub.s32 0, %v377
        %v379 = vrot.slane %v374, %v378
        %381 = vmatprep.subr.mxu0 0.0
        %382 = vmatpush1.msra.mxu0 %v373
        %383 = vmatprep.subr.mxu0 0.0
        %384 = vmatpush1.msra.mxu0 %v372
        %385 = vmatprep.subr.mxu0 0.0
        %386 = vmatpush1.msra.mxu0 %v371
        %387 = vmatprep.subr.mxu0 0.0
        %388 = vmatpush1.msra.mxu0 %v370
        %389 = vmatprep.subr.mxu0 0.0
        %390 = vmatpush1.msra.mxu0 %v369
        %391 = vmatprep.subr.mxu0 0.0
        %392 = vmatpush1.msra.mxu0 %v368
        %393 = vmatprep.subr.mxu0 0.0
        %394 = vmatpush1.msra.mxu0 %v367
        %395 = vmatprep.subr.mxu0 0.0
        %396 = vmatpush1.msra.mxu0 %v366
        %397 = vmatprep.subr.mxu0 0.0
        %398 = vmatpush1.msra.mxu0 %v365
        %399 = vmatprep.subr.mxu0 0.0
        %400 = vmatpush1.msra.mxu0 %v364
        %401 = vmatprep.subr.mxu0 0.0
        %402 = vmatpush1.msra.mxu0 %v363
        %403 = vmatprep.subr.mxu0 0.0
        %404 = vmatpush1.msra.mxu0 %v362
        %405 = vmatprep.subr.mxu0 0.0
        %406 = vmatpush1.msra.mxu0 %v361
        %407 = vmatprep.subr.mxu0 0.0
        %408 = vmatpush1.msra.mxu0 %v360
        %409 = vmatprep.subr.mxu0 0.0
        %410 = vmatpush1.msra.mxu0 %v359
        %411 = vmatprep.subr.mxu0 0.0
        %412 = vmatpush1.msra.mxu0 %v358
        %413 = vmatprep.subr.mxu0 0.0
        %414 = vmatpush2.msra.mxu0 0.0
        %415 = vmatprep.subr.mxu0 0.0
        %416 = vmatpush2.msra.mxu0 0.0
        %417 = vmatprep.subr.mxu0 0.0
        %418 = vmatpush2.msra.mxu0 0.0
        %419 = vmatprep.subr.mxu0 0.0
        %420 = vmatpush2.msra.mxu0 0.0
        %421 = vmatprep.subr.mxu0 0.0
        %422 = vmatpush2.msra.mxu0 0.0
        %423 = vmatprep.subr.mxu0 0.0
        %424 = vmatpush2.msra.mxu0 0.0
        %425 = vmatprep.subr.mxu0 0.0
        %426 = vmatpush2.msra.mxu0 0.0
        %427 = vmatprep.subr.mxu0 0.0
        %428 = vmatpush2.msra.mxu0 0.0
        %429 = vmatprep.subr.mxu0 0.0
        %430 = vmatpush2.msra.mxu0 0.0
        %431 = vmatprep.subr.mxu0 0.0
        %432 = vmatpush2.msra.mxu0 0.0
        %433 = vmatprep.subr.mxu0 0.0
        %434 = vmatpush2.msra.mxu0 0.0
        %435 = vmatprep.subr.mxu0 0.0
        %436 = vmatpush2.msra.mxu0 0.0
        %437 = vmatprep.subr.mxu0 0.0
        %438 = vmatpush2.msra.mxu0 0.0
        %439 = vmatprep.subr.mxu0 0.0
        %440 = vmatpush2.msra.mxu0 0.0
        %441 = vmatprep.subr.mxu0 0.0
        %442 = vmatpush2.msra.mxu0 0.0
        %443 = vmatprep.subr.mxu0 0.0
        %444 = vmatpush2.msra.mxu0 0.0
        %445 = vmatprep.mubr.f32.mxu0 0.0
        %446 = vmatmul.mubr.f32.gmra.mxu0 %v357
        %v447 = vpop.f32.mrf.mxu0
        %v448 = vadd.f32 %v379, %v447
        %v449 = vpop.f32.mrf.mxu0
        %450 = vdwg.mxu0
        %v451 = vld [vmem:[%s5] sm:$0x1]
        %v452 = vld [vmem:[%s6] sm:$0x1]
        %453 = vadd.xlane.f32.xlu0 %v448
        %v454 = vpop.xlane.xlu0 %453
        %v455 = vrcp.pop 128.0
        %v456 = vmul.f32 %v454, %v455
        %v457 = vsub.f32 %v448, %v456
        %v458 = vmul.f32 %v457, %v457
        %459 = vadd.xlane.f32.xlu0 %v458
        %v460 = vpop.xlane.xlu0 %459
        %v461 = vmul.f32 %v460, %v455
        %v462 = vadd.f32 %v461, 1e-05
        %v463 = vrsqrt.pop %v462
        %v464 = vmul.f32 %v457, %v463
        %v466 = vlaneseq
        %v467 = vshrl.u32 %v466, 7
        %v468 = vsub.s32 0, %v467
        %v469 = vrot.slane %v451, %v468
        %v471 = vmul.f32 %v464, %v469
        %v473 = vlaneseq
        %v474 = vshrl.u32 %v473, 7
        %v475 = vsub.s32 0, %v474
        %v476 = vrot.slane %v452, %v475
        %v478 = vadd.f32 %v471, %v476
        %479 = vst [vmem:[%s284] sm:$0xff] %v478
        %s480 = sand.u32 %s182, 1
        %s481 = scalar_lea.sflag [#allocation4], %s480
        %s482 = sand.u32 %s182, 1
        %s483 = smul.addr %s482, 8
        %s484 = scalar_lea.vmem [#allocation5], %s483
        // Predicated region
        $region53: #{tpu_custom_call.1} parent=47 // pred_check
          %p485 = pneg %p192
        $region54: #{tpu_custom_call.1} parent=47 // pred_check_branch
          %487 = sbr.rel (%p485) target = $region56
        $region55: #{tpu_custom_call.1} parent=47 // pred_region
          %s489 = ssub.s32 128, 128
          %490 = vsyncadd %s481, %s489
          %s491 = smul.addr %s22, 128
          %s492 = scalar_lea.hbm %s7, %s491
          %s494 = sshll.u32 %s484, 4
          %s495 = int_to_ptr.vmem [resolvable:$true] %s494
          %497 = dma.vmem_to_hbm [thread:$0]  %s495, 128, %s492, %s481
        $region56: #{tpu_custom_call.1} parent=47 // pred_fallthru
          _
      $region48: #{tpu_custom_call.1} parent=5 // pred_fallthru
        _
      %p498 = scmp.le.s32.totalorder 2, %s17
      // Predicated region
      $region57: #{tpu_custom_call.1} parent=5 // pred_check
        %p499 = pneg %p498
      $region58: #{tpu_custom_call.1} parent=5 // pred_check_branch
        %501 = sbr.rel (%p499) target = $region60
      $region59: #{tpu_custom_call.1} parent=5 // pred_region
        %s502 = ssub.s32 %s17, 2
        // Predicated region
        $region61: #{tpu_custom_call.1} parent=59 // pred_check
          %p503 = pneg %p198
        $region62: #{tpu_custom_call.1} parent=59 // pred_check_branch
          %505 = sbr.rel (%p503) target = $region64
        $region63: #{tpu_custom_call.1} parent=59 // pred_region
          %s506 = sand.u32 %s183, 1
          %s507 = scalar_lea.sflag [#allocation4], %s506
          %s508 = sand.u32 %s183, 1
          %s509 = smul.addr %s508, 8
          %s510 = scalar_lea.vmem [#allocation5], %s509
          %511 = dma.done %s507, 128
        $region64: #{tpu_custom_call.1} parent=59 // pred_fallthru
          _
      $region60: #{tpu_custom_call.1} parent=5 // pred_fallthru
        _
    $region6: #{tpu_custom_call.1} parent=1 // loop_footer
      %s21 = sadd.s32 1, %s17
    $region7: #{tpu_custom_call.1} parent=1 // loop_footer_branch
      %16 = sbr.rel target = $region3
    $region8: #{tpu_custom_call.1} parent=1 // loop_exit
      _
    %512 = vsyncpa [#allocation3], 1
    %s513 = scalar_lea.sflag [#allocation3], 1
    %514 = vsyncpa %s513, 1
    %515 = vsyncpa [#allocation4], 1
    %s516 = scalar_lea.sflag [#allocation4], 1
    %517 = vsyncpa %s516, 1

</llo_original>
